<compile_context>
chip_gen: v6e
topology: v6e:2x2x1
jax: 0.10.0
libtpu: 0.0.40
codegen_flags: <defaults>
</compile_context>

<pallas_src>
import functools

import jax
import jax.numpy as jnp
from jax.experimental import pallas as pl
from jax.experimental.pallas import tpu as pltpu


def _round_up(v, m):
    return ((v + m - 1) // m) * m


def _rbfn_kernel(x_ref, c2_ref, beta_ref, rhs_ref, wrt_ref, b_ref, out_ref, *, c_pad):
    x = x_ref[...]  # (TILE_N, F) f32

    # Fused x-side MXU pass: y = x @ [2*centers^T | Wx^T]   (bf16 in, f32 acc)
    y = jnp.dot(x.astype(jnp.bfloat16), rhs_ref[...],
                preferred_element_type=jnp.float32)        # (TILE_N, C_pad + O_pad)
    xc2 = y[:, :c_pad]                                      # x @ (2 * centers^T)
    xw = y[:, c_pad:]                                       # x @ Wx^T

    # Squared distance via the expansion form; center-side norm is precomputed.
    x2 = jnp.sum(x * x, axis=1, keepdims=True)              # (TILE_N, 1) f32
    dist2 = jnp.maximum(x2 + c2_ref[...] - xc2, 0.0)        # clamp cancellation negatives
    radial = jnp.exp(-beta_ref[...] * dist2)                # (TILE_N, C_pad) f32

    out = (jnp.dot(radial.astype(jnp.bfloat16), wrt_ref[...],
                   preferred_element_type=jnp.float32)
           + xw + b_ref[...])                               # (TILE_N, O_pad)
    out_ref[...] = out.astype(out_ref.dtype)


def rbfn_forward(batches, centers, beta, weight, bias, *, tile_n=512):
    """batches: (N, F); centers: (C, F); beta: (1, C);
       weight: (n_out, F + C); bias: (n_out,).  Returns (N, n_out) f32."""
    N, F = batches.shape
    C = centers.shape[0]
    n_out = weight.shape[0]

    C_pad = _round_up(C, 128)          # lane-pad centers
    O_pad = _round_up(n_out, 128)      # lane-pad outputs (lane-dense stores)
    TILE_N = min(tile_n, _round_up(N, 8))
    N_pad = _round_up(N, TILE_N)

    # ---- wrapper-side precompute / padding (all mathematically inert) ----
    x = jnp.pad(batches.astype(jnp.float32), ((0, N_pad - N), (0, 0)))

    centers_f32 = centers.astype(jnp.float32)
    c2 = jnp.sum(centers_f32 * centers_f32, axis=1)[None, :]          # (1, C)
    c2 = jnp.pad(c2, ((0, 0), (0, C_pad - C)))                        # (1, C_pad)

    beta_p = jnp.pad(beta.astype(jnp.float32), ((0, 0), (0, C_pad - C)))  # (1, C_pad)

    ct2 = jnp.pad(2.0 * centers_f32.T, ((0, 0), (0, C_pad - C)))      # (F, C_pad)
    wxt = jnp.pad(weight[:, :F].astype(jnp.float32).T,
                  ((0, 0), (0, O_pad - n_out)))                       # (F, O_pad)
    rhs = jnp.concatenate([ct2, wxt], axis=1).astype(jnp.bfloat16)    # (F, C_pad+O_pad)

    wrt = jnp.pad(weight[:, F:].astype(jnp.float32).T,
                  ((0, C_pad - C), (0, O_pad - n_out))).astype(jnp.bfloat16)  # (C_pad, O_pad)
    b = jnp.pad(bias.astype(jnp.float32)[None, :], ((0, 0), (0, O_pad - n_out)))  # (1, O_pad)

    grid = (N_pad // TILE_N,)
    kernel = functools.partial(_rbfn_kernel, c_pad=C_pad)

    out = pl.pallas_call(
        kernel,
        out_shape=jax.ShapeDtypeStruct((N_pad, O_pad), jnp.float32),
        grid=grid,
        in_specs=[
            pl.BlockSpec((TILE_N, F), lambda i: (i, 0)),              # x tile (pipelined)
            pl.BlockSpec((1, C_pad), lambda i: (0, 0)),               # ||c||^2  (resident)
            pl.BlockSpec((1, C_pad), lambda i: (0, 0)),               # beta     (resident)
            pl.BlockSpec((F, C_pad + O_pad), lambda i: (0, 0)),       # [2c^T|Wx^T] (resident)
            pl.BlockSpec((C_pad, O_pad), lambda i: (0, 0)),           # Wr^T     (resident)
            pl.BlockSpec((1, O_pad), lambda i: (0, 0)),               # bias     (resident)
        ],
        out_specs=pl.BlockSpec((TILE_N, O_pad), lambda i: (i, 0)),
        compiler_params=pltpu.CompilerParams(
            dimension_semantics=("parallel",),
        ),
    )(x, c2, beta_p, rhs, wrt, b)

    return out[:N, :n_out]


def _rbfn_reference(batches, centers, beta, weight, bias):
    """Pure-JAX f32 reference matching the (bug-fixed) PyTorch forward."""
    diff = centers[None, :, :] - batches[:, None, :]          # (N, C, F)
    radial = jnp.exp(-beta * jnp.sum(diff * diff, axis=2))    # (N, C)
    feat = jnp.concatenate([batches, radial], axis=1)         # (N, F+C)
    return feat @ weight.T + bias[None, :]


if __name__ == "__main__":
    # small, deterministic shapes: batch=8, feature_dim=32, num_centers=16, n_out=10
    N, F, C, n_out = 8, 32, 16, 10

    key = jax.random.PRNGKey(0)
    k_x, k_c, k_w = jax.random.split(key, 3)

    batches = jax.random.normal(k_x, (N, F), dtype=jnp.float32)
    centers = jax.random.normal(k_c, (C, F), dtype=jnp.float32)   # nn.Parameter(centers)
    beta = jnp.ones((1, C), dtype=jnp.float32)                    # torch.ones(1, num_centers)
    # nn.Linear init per initialize_weights(): weight ~ N(0, 0.02), bias = 0
    weight = 0.02 * jax.random.normal(k_w, (n_out, F + C), dtype=jnp.float32)
    bias = jnp.zeros((n_out,), dtype=jnp.float32)

    out = rbfn_forward(batches, centers, beta, weight, bias)
    out = jax.block_until_ready(out)
    assert out.shape == (N, n_out) and out.dtype == jnp.float32

    ref = _rbfn_reference(batches, centers, beta, weight, bias)
    assert jnp.all(jnp.isfinite(out))
    assert jnp.allclose(out, ref, atol=2e-2, rtol=2e-2), \
        f"max abs err {jnp.max(jnp.abs(out - ref))}"

    print("KERNEL_OK")
</pallas_src>

<mosaic_0001>
module attributes {stable_mosaic.version = 11 : i64} {
  func.func @_rbfn_kernel(%arg0: i32, %arg1: memref<8x32xf32, #tpu.memory_space<vmem>>, %arg2: memref<1x128xf32, #tpu.memory_space<vmem>>, %arg3: memref<1x128xf32, #tpu.memory_space<vmem>>, %arg4: memref<32x256xbf16, #tpu.memory_space<vmem>>, %arg5: memref<128x128xbf16, #tpu.memory_space<vmem>>, %arg6: memref<1x128xf32, #tpu.memory_space<vmem>>, %arg7: memref<8x128xf32, #tpu.memory_space<vmem>>) attributes {dimension_semantics = [#tpu.dimension_semantics<parallel>], iteration_bounds = array<i64: 1>, scalar_prefetch = 0 : i64, scratch_operands = 0 : i64, tpu.core_type = #tpu.core_type<tc>, window_params = [{transform_indices = @transform_0, window_bounds = array<i64: 8, 32>}, {pipeline_mode = #tpu.pipeline_mode<synchronous>, transform_indices = @transform_1, window_bounds = array<i64: 1, 128>}, {pipeline_mode = #tpu.pipeline_mode<synchronous>, transform_indices = @transform_2, window_bounds = array<i64: 1, 128>}, {pipeline_mode = #tpu.pipeline_mode<synchronous>, transform_indices = @transform_3, window_bounds = array<i64: 32, 256>}, {pipeline_mode = #tpu.pipeline_mode<synchronous>, transform_indices = @transform_4, window_bounds = array<i64: 128, 128>}, {pipeline_mode = #tpu.pipeline_mode<synchronous>, transform_indices = @transform_5, window_bounds = array<i64: 1, 128>}, {transform_indices = @transform_6, window_bounds = array<i64: 8, 128>}]} {
    %c0 = arith.constant 0 : index
    %c0_0 = arith.constant 0 : index
    %0 = vector.load %arg1[%c0, %c0_0] : memref<8x32xf32, #tpu.memory_space<vmem>>, vector<8x32xf32>
    %1 = arith.truncf %0 : vector<8x32xf32> to vector<8x32xbf16>
    %c0_1 = arith.constant 0 : index
    %c0_2 = arith.constant 0 : index
    %2 = vector.load %arg4[%c0_1, %c0_2] : memref<32x256xbf16, #tpu.memory_space<vmem>>, vector<32x256xbf16>
    %cst = arith.constant dense<0.000000e+00> : vector<8x256xf32>
    %3 = tpu.matmul %1, %2, %cst {dimension_numbers = #tpu.dot_dimension_numbers<[1], [0], [0], [1], [0, 0, 1, 1], [], []>} : vector<8x32xbf16>, vector<32x256xbf16>, vector<8x256xf32> -> vector<8x256xf32>
    %4 = vector.extract_strided_slice %3 {offsets = [0, 0], sizes = [8, 128], strides = [1, 1]} : vector<8x256xf32> to vector<8x128xf32>
    %5 = vector.extract_strided_slice %3 {offsets = [0, 128], sizes = [8, 128], strides = [1, 1]} : vector<8x256xf32> to vector<8x128xf32>
    %6 = arith.mulf %0, %0 : vector<8x32xf32>
    %cst_3 = arith.constant dense<0.000000e+00> : vector<8xf32>
    %7 = vector.multi_reduction <add>, %6, %cst_3 [1] : vector<8x32xf32> to vector<8xf32>
    %8 = vector.shape_cast %7 : vector<8xf32> to vector<8x1xf32>
    %c0_4 = arith.constant 0 : index
    %c0_5 = arith.constant 0 : index
    %9 = vector.load %arg2[%c0_4, %c0_5] : memref<1x128xf32, #tpu.memory_space<vmem>>, vector<1x128xf32>
    %10 = vector.broadcast %8 : vector<8x1xf32> to vector<8x128xf32>
    %11 = vector.broadcast %9 : vector<1x128xf32> to vector<8x128xf32>
    %12 = arith.addf %10, %11 : vector<8x128xf32>
    %13 = arith.subf %12, %4 : vector<8x128xf32>
    %cst_6 = arith.constant 0.000000e+00 : f32
    %14 = vector.broadcast %cst_6 : f32 to vector<8x128xf32>
    %15 = arith.maximumf %13, %14 : vector<8x128xf32>
    %c0_7 = arith.constant 0 : index
    %c0_8 = arith.constant 0 : index
    %16 = vector.load %arg3[%c0_7, %c0_8] : memref<1x128xf32, #tpu.memory_space<vmem>>, vector<1x128xf32>
    %cst_9 = arith.constant 0.000000e+00 : f32
    %17 = vector.broadcast %cst_9 : f32 to vector<1x128xf32>
    %18 = arith.subf %17, %16 : vector<1x128xf32>
    %19 = vector.broadcast %18 : vector<1x128xf32> to vector<8x128xf32>
    %20 = arith.mulf %19, %15 : vector<8x128xf32>
    %21 = math.exp %20 : vector<8x128xf32>
    %22 = arith.truncf %21 : vector<8x128xf32> to vector<8x128xbf16>
    %c0_10 = arith.constant 0 : index
    %c0_11 = arith.constant 0 : index
    %23 = vector.load %arg5[%c0_10, %c0_11] : memref<128x128xbf16, #tpu.memory_space<vmem>>, vector<128x128xbf16>
    %cst_12 = arith.constant dense<0.000000e+00> : vector<8x128xf32>
    %24 = tpu.matmul %22, %23, %cst_12 {dimension_numbers = #tpu.dot_dimension_numbers<[1], [0], [0], [1], [0, 0, 1, 1], [], []>} : vector<8x128xbf16>, vector<128x128xbf16>, vector<8x128xf32> -> vector<8x128xf32>
    %25 = arith.addf %24, %5 : vector<8x128xf32>
    %c0_13 = arith.constant 0 : index
    %c0_14 = arith.constant 0 : index
    %26 = vector.load %arg6[%c0_13, %c0_14] : memref<1x128xf32, #tpu.memory_space<vmem>>, vector<1x128xf32>
    %27 = vector.broadcast %26 : vector<1x128xf32> to vector<8x128xf32>
    %28 = arith.addf %25, %27 : vector<8x128xf32>
    %c0_15 = arith.constant 0 : index
    %c0_16 = arith.constant 0 : index
    %29 = vector.load %arg7[%c0_15, %c0_16] : memref<8x128xf32, #tpu.memory_space<vmem>>, vector<8x128xf32>
    tpu.vector_store %arg7[%c0_15, %c0_16], %28 {strides = array<i32>} : memref<8x128xf32, #tpu.memory_space<vmem>>, vector<8x128xf32>,
    return
  }
  func.func @transform_0(%arg0: i32) -> (i32, i32) {
    %c0_i32 = arith.constant 0 : i32
    %c0_i32_0 = arith.constant 0 : i32
    return %arg0, %c0_i32 : i32, i32
  }
  func.func @transform_1(%arg0: i32) -> (i32, i32) {
    %c0_i32 = arith.constant 0 : i32
    %c0_i32_0 = arith.constant 0 : i32
    %c0_i32_1 = arith.constant 0 : i32
    return %c0_i32, %c0_i32_0 : i32, i32
  }
  func.func @transform_2(%arg0: i32) -> (i32, i32) {
    %c0_i32 = arith.constant 0 : i32
    %c0_i32_0 = arith.constant 0 : i32
    %c0_i32_1 = arith.constant 0 : i32
    return %c0_i32, %c0_i32_0 : i32, i32
  }
  func.func @transform_3(%arg0: i32) -> (i32, i32) {
    %c0_i32 = arith.constant 0 : i32
    %c0_i32_0 = arith.constant 0 : i32
    %c0_i32_1 = arith.constant 0 : i32
    return %c0_i32, %c0_i32_0 : i32, i32
  }
  func.func @transform_4(%arg0: i32) -> (i32, i32) {
    %c0_i32 = arith.constant 0 : i32
    %c0_i32_0 = arith.constant 0 : i32
    %c0_i32_1 = arith.constant 0 : i32
    return %c0_i32, %c0_i32_0 : i32, i32
  }
  func.func @transform_5(%arg0: i32) -> (i32, i32) {
    %c0_i32 = arith.constant 0 : i32
    %c0_i32_0 = arith.constant 0 : i32
    %c0_i32_1 = arith.constant 0 : i32
    return %c0_i32, %c0_i32_0 : i32, i32
  }
  func.func @transform_6(%arg0: i32) -> (i32, i32) {
    %c0_i32 = arith.constant 0 : i32
    %c0_i32_0 = arith.constant 0 : i32
    return %arg0, %c0_i32 : i32, i32
  }
}

</mosaic_0001>

<llo_original>
// kernel: tpu_custom_call.1
$region0: #{tpu_custom_call.1}
  #allocation0 [shape = 'u32[]', space=smem, size = 0x4, offset = 0x4, fixed_abs, tag = 'smem constant byte address 0x4 - core index']
  #allocation1 [shape = 'u32[144,128]{1,0:T(1,128)}', space=vmem, size = 0x12000, scoped, tag = 'internal scratch']
  %s0 = inlined_call_operand.hbm [shape: f32[8,32], index: 0, kind: input, shape index: {}]
  %s1 = inlined_call_operand.vmem [shape: f32[1,128], index: 1, kind: input, shape index: {}]
  %s2 = inlined_call_operand.vmem [shape: f32[1,128], index: 2, kind: input, shape index: {}]
  %s3 = inlined_call_operand.hbm [shape: bf16[32,256], index: 3, kind: input, shape index: {}]
  %s4 = inlined_call_operand.hbm [shape: bf16[128,128], index: 4, kind: input, shape index: {}]
  %s5 = inlined_call_operand.vmem [shape: f32[1,128], index: 5, kind: input, shape index: {}]
  %s6 = inlined_call_operand.hbm [shape: f32[8,128], index: 6, kind: output, shape index: {}]
  %s7 = sld [smem:[#allocation0]]
  $region46: #{tpu_custom_call.1} parent=0
    _
  %s9 = ssub.s32 1, %s7
  %s10 = scalar_select 0, %s9, %s7
  $region1: #{tpu_custom_call.1} parent=0
    #allocation2 [shape = 'u8[4096]{0}', space=vmem, size = 0x1000, scoped, tag = 'input window, operand 0, single buffered']
    #allocation3 [shape = 's32[1]{0}', space=sflag, size = 0x4, scoped, tag = 'scoped memory for tpu_custom_call.1']
    #allocation4 [shape = 's32[1]{0}', space=sflag, size = 0x4, scoped, tag = 'scoped memory for tpu_custom_call.1']
    #allocation5 [shape = 'u8[16384]{0}', space=vmem, size = 0x4000, scoped, tag = 'input window, operand 3, single buffered']
    #allocation6 [shape = 's32[1]{0}', space=sflag, size = 0x4, scoped, tag = 'scoped memory for tpu_custom_call.1']
    #allocation7 [shape = 'u8[32768]{0}', space=vmem, size = 0x8000, scoped, tag = 'input window, operand 4, single buffered']
    #allocation8 [shape = 'u8[4096]{0}', space=vmem, size = 0x1000, scoped, tag = 'output window, operand 0, single buffered']
    %11 = vsyncpa [#allocation3], 0
    %12 = vsyncpa [#allocation6], 0
    %13 = vsyncpa [#allocation4], 0
    // Predicated region
    $region2: #{tpu_custom_call.1} parent=1 // pred_check
      _
    $region3: #{tpu_custom_call.1} parent=1 // pred_check_branch
      %15 = sbr.rel (0) target = $region5
    $region4: #{tpu_custom_call.1} parent=1 // pred_region
      %s17 = ssub.s32 128, 128
      %18 = vsyncadd [#allocation3], %s17
      %s20 = sshll.u32 [#allocation2], 4
      %s21 = int_to_ptr.vmem [resolvable:$true] %s20
      %23 = dma.hbm_to_vmem [thread:$0]  %s0, 128, %s21, [#allocation3]
    $region5: #{tpu_custom_call.1} parent=1 // pred_fallthru
      _
    // Predicated region
    $region6: #{tpu_custom_call.1} parent=1 // pred_check
      _
    $region7: #{tpu_custom_call.1} parent=1 // pred_check_branch
      %25 = sbr.rel (0) target = $region9
    $region8: #{tpu_custom_call.1} parent=1 // pred_region
      _
    $region9: #{tpu_custom_call.1} parent=1 // pred_fallthru
      _
    // Predicated region
    $region10: #{tpu_custom_call.1} parent=1 // pred_check
      _
    $region11: #{tpu_custom_call.1} parent=1 // pred_check_branch
      %27 = sbr.rel (0) target = $region13
    $region12: #{tpu_custom_call.1} parent=1 // pred_region
      _
    $region13: #{tpu_custom_call.1} parent=1 // pred_fallthru
      _
    // Predicated region
    $region14: #{tpu_custom_call.1} parent=1 // pred_check
      _
    $region15: #{tpu_custom_call.1} parent=1 // pred_check_branch
      %29 = sbr.rel (0) target = $region17
    $region16: #{tpu_custom_call.1} parent=1 // pred_region
      %s31 = ssub.s32 512, 512
      %32 = vsyncadd [#allocation6], %s31
      %s33 = sshll.u32 [#allocation5], 4
      %s34 = int_to_ptr.vmem [resolvable:$true] %s33
      %39 = dma.hbm_to_vmem [thread:$0]  %s3, 512, %s34, [#allocation6], 128, 128, 8
    $region17: #{tpu_custom_call.1} parent=1 // pred_fallthru
      _
    // Predicated region
    $region18: #{tpu_custom_call.1} parent=1 // pred_check
      _
    $region19: #{tpu_custom_call.1} parent=1 // pred_check_branch
      %41 = sbr.rel (0) target = $region21
    $region20: #{tpu_custom_call.1} parent=1 // pred_region
      %s43 = ssub.s32 1024, 1024
      %44 = vsyncadd [#allocation6], %s43
      %s45 = sshll.u32 [#allocation7], 4
      %s46 = int_to_ptr.vmem [resolvable:$true] %s45
      %51 = dma.hbm_to_vmem [thread:$0]  %s4, 1024, %s46, [#allocation6], 64, 64, 4
    $region21: #{tpu_custom_call.1} parent=1 // pred_fallthru
      _
    // Predicated region
    $region22: #{tpu_custom_call.1} parent=1 // pred_check
      _
    $region23: #{tpu_custom_call.1} parent=1 // pred_check_branch
      %53 = sbr.rel (0) target = $region25
    $region24: #{tpu_custom_call.1} parent=1 // pred_region
      _
    $region25: #{tpu_custom_call.1} parent=1 // pred_fallthru
      _
    // Predicated region
    $region26: #{tpu_custom_call.1} parent=1 // pred_check
      _
    $region27: #{tpu_custom_call.1} parent=1 // pred_check_branch
      %55 = sbr.rel (0) target = $region29
    $region28: #{tpu_custom_call.1} parent=1 // pred_region
      %56 = dma.done [#allocation3], 128
    $region29: #{tpu_custom_call.1} parent=1 // pred_fallthru
      _
    // Predicated region
    $region30: #{tpu_custom_call.1} parent=1 // pred_check
      _
    $region31: #{tpu_custom_call.1} parent=1 // pred_check_branch
      %58 = sbr.rel (0) target = $region33
    $region32: #{tpu_custom_call.1} parent=1 // pred_region
      %59 = dma.done [#allocation6], 512
    $region33: #{tpu_custom_call.1} parent=1 // pred_fallthru
      _
    // Predicated region
    $region34: #{tpu_custom_call.1} parent=1 // pred_check
      _
    $region35: #{tpu_custom_call.1} parent=1 // pred_check_branch
      %61 = sbr.rel (0) target = $region37
    $region36: #{tpu_custom_call.1} parent=1 // pred_region
      %62 = dma.done [#allocation6], 1024
    $region37: #{tpu_custom_call.1} parent=1 // pred_fallthru
      _
    %v64 = vld [vmem:[#allocation2] sm:$0xff]
    %v65 = vpack.c.bf16 %v64, %v64
    %v66 = vld [vmem:[#allocation5] sm:$0xff]
    %v67 = vld [vmem:[#allocation5 + $0x8] sm:$0xff]
    %v68 = vld [vmem:[#allocation5 + $0x10] sm:$0xff]
    %v69 = vld [vmem:[#allocation5 + $0x18] sm:$0xff]
    %v74 = vunpack.c.l.b16 %v66
    %v75 = vunpack.c.h.b16 %v66
    %v76 = vunpack.c.l.b16 %v67
    %v77 = vunpack.c.h.b16 %v67
    %v78 = vunpack.c.l.b16 %v68
    %v79 = vunpack.c.h.b16 %v68
    %v80 = vunpack.c.l.b16 %v69
    %v81 = vunpack.c.h.b16 %v69
    %v82 = vpack.c.b16 %v76, %v74
    %v83 = vpack.c.b16 %v77, %v75
    %v84 = vpack.c.b16 %v80, %v78
    %v85 = vpack.c.b16 %v81, %v79
    %vm90 = vcmask 261120
    %v92 = vsel %vm90, %v65, 0
    %94 = vmatprep.subr.bf16.mxu0 0
    %95 = vmatpush1.bf16.msra.mxu0 0
    %96 = vmatprep.subr.bf16.mxu0 0
    %97 = vmatpush1.bf16.msra.mxu0 0
    %98 = vmatprep.subr.bf16.mxu0 0
    %99 = vmatpush1.bf16.msra.mxu0 0
    %100 = vmatprep.subr.bf16.mxu0 0
    %101 = vmatpush1.bf16.msra.mxu0 0
    %102 = vmatprep.subr.bf16.mxu0 0
    %103 = vmatpush1.bf16.msra.mxu0 0
    %104 = vmatprep.subr.bf16.mxu0 0
    %105 = vmatpush1.bf16.msra.mxu0 0
    %106 = vmatprep.subr.bf16.mxu0 %v85
    %107 = vmatpush1.bf16.msra.mxu0 %v84
    %108 = vmatprep.subr.bf16.mxu0 %v83
    %109 = vmatpush1.bf16.msra.mxu0 %v82
    %110 = vmatprep.subr.bf16.mxu0 0
    %111 = vmatpush2.bf16.msra.mxu0 0
    %112 = vmatprep.subr.bf16.mxu0 0
    %113 = vmatpush2.bf16.msra.mxu0 0
    %114 = vmatprep.subr.bf16.mxu0 0
    %115 = vmatpush2.bf16.msra.mxu0 0
    %116 = vmatprep.subr.bf16.mxu0 0
    %117 = vmatpush2.bf16.msra.mxu0 0
    %118 = vmatprep.subr.bf16.mxu0 0
    %119 = vmatpush2.bf16.msra.mxu0 0
    %120 = vmatprep.subr.bf16.mxu0 0
    %121 = vmatpush2.bf16.msra.mxu0 0
    %122 = vmatprep.subr.bf16.mxu0 0
    %123 = vmatpush2.bf16.msra.mxu0 0
    %124 = vmatprep.subr.bf16.mxu0 0
    %125 = vmatpush2.bf16.msra.mxu0 0
    %126 = vmatprep.mubr.bf16.mxu0 0
    %127 = vmatmul.mubr.bf16.gmra.mxu0 %v92
    %v128 = vpop.f32.mrf.mxu0
    %v129 = vadd.f32 0.0, %v128
    %v130 = vpop.f32.mrf.mxu0
    %v131 = vadd.f32 0.0, %v130
    %v132 = vpop.f32.mrf.mxu0
    %v133 = vpop.f32.mrf.mxu0
    %134 = vdwg.mxu0
    %v135 = vmul.f32 %v64, %v64
    %v136 = vsel %vm90, %v135, 0.0
    %137 = vadd.xlane.f32.xlu0 %v136
    %v138 = vpop.xlane.xlu0 %137
    %v139 = vld [vmem:[%s1] sm:$0x1]
    %v141 = vlaneseq
    %v142 = vshrl.u32 %v141, 7
    %v143 = vsub.s32 0, %v142
    %v144 = vrot.slane %v139, %v143
    %v146 = vadd.f32 %v138, %v144
    %v147 = vsub.f32 %v146, %v129
    %v148 = vmax.f32 %v147, 0.0
    %v149 = vld [vmem:[%s2] sm:$0x1]
    %v150 = vsub.f32 0.0, %v149
    %v152 = vlaneseq
    %v153 = vshrl.u32 %v152, 7
    %v154 = vsub.s32 0, %v153
    %v155 = vrot.slane %v150, %v154
    %v157 = vmul.f32 %v155, %v148
    %v158 = vmul.f32 %v157, 1.442695
    %v159 = vpow.pop %v158
    %v160 = vpack.c.bf16 %v159, %v159
    %v161 = vld [vmem:[#allocation7] sm:$0xf]
    %v162 = vld [vmem:[#allocation7 + $0x4] sm:$0xf]
    %v163 = vld [vmem:[#allocation7 + $0x8] sm:$0xf]
    %v164 = vld [vmem:[#allocation7 + $0xc] sm:$0xf]
    %v165 = vld [vmem:[#allocation7 + $0x10] sm:$0xf]
    %v166 = vld [vmem:[#allocation7 + $0x14] sm:$0xf]
    %v167 = vld [vmem:[#allocation7 + $0x18] sm:$0xf]
    %v168 = vld [vmem:[#allocation7 + $0x1c] sm:$0xf]
    %v169 = vld [vmem:[#allocation7 + $0x20] sm:$0xf]
    %v170 = vld [vmem:[#allocation7 + $0x24] sm:$0xf]
    %v171 = vld [vmem:[#allocation7 + $0x28] sm:$0xf]
    %v172 = vld [vmem:[#allocation7 + $0x2c] sm:$0xf]
    %v173 = vld [vmem:[#allocation7 + $0x30] sm:$0xf]
    %v174 = vld [vmem:[#allocation7 + $0x34] sm:$0xf]
    %v175 = vld [vmem:[#allocation7 + $0x38] sm:$0xf]
    %v176 = vld [vmem:[#allocation7 + $0x3c] sm:$0xf]
    %v193 = vunpack.c.l.b16 %v161
    %v194 = vunpack.c.l.b16 %v162
    %v195 = vunpack.c.l.b16 %v163
    %v196 = vunpack.c.l.b16 %v164
    %v197 = vunpack.c.l.b16 %v165
    %v198 = vunpack.c.l.b16 %v166
    %v199 = vunpack.c.l.b16 %v167
    %v200 = vunpack.c.l.b16 %v168
    %v201 = vunpack.c.l.b16 %v169
    %v202 = vunpack.c.l.b16 %v170
    %v203 = vunpack.c.l.b16 %v171
    %v204 = vunpack.c.l.b16 %v172
    %v205 = vunpack.c.l.b16 %v173
    %v206 = vunpack.c.l.b16 %v174
    %v207 = vunpack.c.l.b16 %v175
    %v208 = vunpack.c.l.b16 %v176
    %v209 = vpack.c.b16 %v194, %v193
    %v210 = vpack.c.b16 %v196, %v195
    %v211 = vpack.c.b16 %v198, %v197
    %v212 = vpack.c.b16 %v200, %v199
    %v213 = vpack.c.b16 %v202, %v201
    %v214 = vpack.c.b16 %v204, %v203
    %v215 = vpack.c.b16 %v206, %v205
    %v216 = vpack.c.b16 %v208, %v207
    %225 = vmatprep.subr.bf16.mxu0 0
    %226 = vmatpush1.bf16.msra.mxu0 %v216
    %227 = vmatprep.subr.bf16.mxu0 0
    %228 = vmatpush1.bf16.msra.mxu0 %v215
    %229 = vmatprep.subr.bf16.mxu0 0
    %230 = vmatpush1.bf16.msra.mxu0 %v214
    %231 = vmatprep.subr.bf16.mxu0 0
    %232 = vmatpush1.bf16.msra.mxu0 %v213
    %233 = vmatprep.subr.bf16.mxu0 0
    %234 = vmatpush1.bf16.msra.mxu0 %v212
    %235 = vmatprep.subr.bf16.mxu0 0
    %236 = vmatpush1.bf16.msra.mxu0 %v211
    %237 = vmatprep.subr.bf16.mxu0 0
    %238 = vmatpush1.bf16.msra.mxu0 %v210
    %239 = vmatprep.subr.bf16.mxu0 0
    %240 = vmatpush1.bf16.msra.mxu0 %v209
    %241 = vmatprep.subr.bf16.mxu0 0
    %242 = vmatpush2.bf16.msra.mxu0 0
    %243 = vmatprep.subr.bf16.mxu0 0
    %244 = vmatpush2.bf16.msra.mxu0 0
    %245 = vmatprep.subr.bf16.mxu0 0
    %246 = vmatpush2.bf16.msra.mxu0 0
    %247 = vmatprep.subr.bf16.mxu0 0
    %248 = vmatpush2.bf16.msra.mxu0 0
    %249 = vmatprep.subr.bf16.mxu0 0
    %250 = vmatpush2.bf16.msra.mxu0 0
    %251 = vmatprep.subr.bf16.mxu0 0
    %252 = vmatpush2.bf16.msra.mxu0 0
    %253 = vmatprep.subr.bf16.mxu0 0
    %254 = vmatpush2.bf16.msra.mxu0 0
    %255 = vmatprep.subr.bf16.mxu0 0
    %256 = vmatpush2.bf16.msra.mxu0 0
    %257 = vmatprep.mubr.bf16.mxu0 0
    %258 = vmatmul.mubr.bf16.gmra.mxu0 %v160
    %v259 = vpop.f32.mrf.mxu0
    %v260 = vadd.f32 %v131, %v259
    %v261 = vpop.f32.mrf.mxu0
    %v262 = vpop.f32.mrf.mxu0
    %v263 = vpop.f32.mrf.mxu0
    %264 = vdwg.mxu0
    %v265 = vld [vmem:[%s5] sm:$0x1]
    %v267 = vlaneseq
    %v268 = vshrl.u32 %v267, 7
    %v269 = vsub.s32 0, %v268
    %v270 = vrot.slane %v265, %v269
    %v272 = vadd.f32 %v260, %v270
    %273 = vst [vmem:[#allocation8] sm:$0xff] %v272
    // Predicated region
    $region38: #{tpu_custom_call.1} parent=1 // pred_check
      _
    $region39: #{tpu_custom_call.1} parent=1 // pred_check_branch
      %275 = sbr.rel (0) target = $region41
    $region40: #{tpu_custom_call.1} parent=1 // pred_region
      %s277 = ssub.s32 128, 128
      %278 = vsyncadd [#allocation4], %s277
      %s280 = sshll.u32 [#allocation8], 4
      %s281 = int_to_ptr.vmem [resolvable:$true] %s280
      %283 = dma.vmem_to_hbm [thread:$0]  %s281, 128, %s6, [#allocation4]
    $region41: #{tpu_custom_call.1} parent=1 // pred_fallthru
      _
    // Predicated region
    $region42: #{tpu_custom_call.1} parent=1 // pred_check
      _
    $region43: #{tpu_custom_call.1} parent=1 // pred_check_branch
      %285 = sbr.rel (0) target = $region45
    $region44: #{tpu_custom_call.1} parent=1 // pred_region
      %286 = dma.done [#allocation4], 128
    $region45: #{tpu_custom_call.1} parent=1 // pred_fallthru
      _
    %287 = vsyncpa [#allocation3], 1
    %288 = vsyncpa [#allocation6], 1
    %289 = vsyncpa [#allocation4], 1

</llo_original>
